<compile_context>
chip_gen: v6e
topology: v6e:2x2x1
jax: 0.10.0
libtpu: 0.0.40
codegen_flags: <defaults>
</compile_context>

<pallas_src>
import jax
import jax.numpy as jnp
from jax.experimental import pallas as pl
from jax.experimental.pallas import tpu as pltpu

_LANE = 512                          # lane-dense minor dim (multiple of 128)
_FAST_PATH_BYTES = 8 * 1024 * 1024   # fused single-pass path up to 8 MiB
_TARGET_BLOCK_ROWS = 1024            # 1024 x 512 x 4 B = 2 MiB per block
_VMEM_LIMIT = 32 * 1024 * 1024       # safe on v5e / v6e / v7x


def _trunc(v):
    # Truncation toward zero in float (== x.int().float() for |v| < 2**31).
    return jnp.where(v >= 0.0, jnp.floor(v), jnp.ceil(v))


def _absmax_2d(v):
    # (R, C) -> (1, 1) abs-max via two keepdims reductions (lanes, then sublanes).
    m = jnp.max(jnp.abs(v), axis=1, keepdims=True)
    return jnp.max(m, axis=0, keepdims=True)


# ---------------- fused single-pass kernel (small/medium activations) --------

def _fused_quant_kernel(x_ref, o_ref, max_ref):
    x = x_ref[...]
    m = _absmax_2d(x)                       # (1, 1) global abs-max
    max_ref[...] = m
    inv = 127.0 / m                         # one scalar-sized divide
    o_ref[...] = _trunc(x * inv)            # per-element multiply + trunc


# ---------------- two-pass kernels (large activations) -----------------------

def _absmax_partial_kernel(x_ref, p_ref):
    # Per-block partial abs-max, broadcast into an (8, 128) tile so the output
    # store is a plain unmasked tile write; reduced with jnp.max outside.
    m = _absmax_2d(x_ref[...])
    p_ref[...] = jnp.broadcast_to(m, p_ref.shape)


def _quant_kernel(scale_ref, x_ref, o_ref):
    # scale = 127 / global_max is precomputed once; kernel is multiply + trunc.
    o_ref[...] = _trunc(x_ref[...] * scale_ref[...])


# ---------------------------------- helpers ----------------------------------

def _choose_block_rows(rows, target):
    """Largest multiple of 8 that divides `rows` and is <= target (>= 8)."""
    b = min(rows, max(8, target))
    b -= b % 8
    while b >= 8 and rows % b:
        b -= 8
    return max(b, 8)


# ---------------------------------- wrapper ----------------------------------

def activation_quantize(x, *, fast_path_bytes=_FAST_PATH_BYTES,
                        target_block_rows=_TARGET_BLOCK_ROWS):
    """Global abs-max fake quantization. Returns (quantized float32, abs-max)."""
    orig_shape = x.shape
    x_flat = jnp.asarray(x, jnp.float32).reshape(-1)
    total = x_flat.shape[0]

    pad = (-total) % _LANE
    if pad:
        # Only hit when numel is not a multiple of 512 (one extra copy).
        x_flat = jnp.pad(x_flat, (0, pad))
    rows = x_flat.shape[0] // _LANE
    x2 = x_flat.reshape(rows, _LANE)

    if rows * _LANE * 4 <= fast_path_bytes:
        # Single pass: read x from HBM once, abs-max + quantize fused.
        q2, max11 = pl.pallas_call(
            _fused_quant_kernel,
            out_shape=(jax.ShapeDtypeStruct((rows, _LANE), jnp.float32),
                       jax.ShapeDtypeStruct((1, 1), jnp.float32)),
            compiler_params=pltpu.CompilerParams(vmem_limit_bytes=_VMEM_LIMIT),
        )(x2)
        max_val = max11[0, 0]
    else:
        # Pad rows to a multiple of 8 so (block_rows, _LANE) tiles are legal.
        row_pad = (-rows) % 8
        if row_pad:
            x2 = jnp.pad(x2, ((0, row_pad), (0, 0)))
            rows += row_pad

        blk_target = max(8, min(rows, target_block_rows) - (min(rows, target_block_rows) % 8))
        block_rows = _choose_block_rows(rows, blk_target)
        if block_rows < 64 and block_rows != blk_target:
            # No decent divisor: pad rows up to a multiple of the target block
            # (rare; one extra copy) instead of crawling through tiny tiles.
            extra = (-rows) % blk_target
            if extra:
                x2 = jnp.pad(x2, ((0, extra), (0, 0)))
                rows += extra
            block_rows = blk_target
        nblocks = rows // block_rows

        # Pass 1: per-block partial abs-max, fully parallel grid (megacore on v7x).
        partials = pl.pallas_call(
            _absmax_partial_kernel,
            out_shape=jax.ShapeDtypeStruct((nblocks * 8, 128), jnp.float32),
            grid_spec=pltpu.PrefetchScalarGridSpec(
                num_scalar_prefetch=0,
                grid=(nblocks,),
                in_specs=[pl.BlockSpec((block_rows, _LANE), lambda i: (i, 0))],
                out_specs=pl.BlockSpec((8, 128), lambda i: (i, 0)),
            ),
            compiler_params=pltpu.CompilerParams(
                dimension_semantics=("parallel",),
                vmem_limit_bytes=_VMEM_LIMIT),
        )(x2)
        max_val = jnp.max(partials)
        scale11 = (127.0 / max_val).reshape(1, 1)   # reciprocal computed once

        # Pass 2: elementwise multiply + trunc with the (1,1) scale in VMEM.
        q2 = pl.pallas_call(
            _quant_kernel,
            out_shape=jax.ShapeDtypeStruct((rows, _LANE), jnp.float32),
            grid_spec=pltpu.PrefetchScalarGridSpec(
                num_scalar_prefetch=0,
                grid=(nblocks,),
                in_specs=[
                    pl.BlockSpec((1, 1), lambda i: (0, 0)),
                    pl.BlockSpec((block_rows, _LANE), lambda i: (i, 0)),
                ],
                out_specs=pl.BlockSpec((block_rows, _LANE), lambda i: (i, 0)),
            ),
            compiler_params=pltpu.CompilerParams(
                dimension_semantics=("parallel",),
                vmem_limit_bytes=_VMEM_LIMIT),
        )(scale11, x2)

    q = q2.reshape(-1)[:total].reshape(orig_shape)
    # TODO(synk): the PyTorch module also stores the max in a Python global via
    # .detach().numpy(); here it is returned as a JAX scalar instead.
    return q, max_val


if __name__ == "__main__":
    def _check(out, act_max, v):
        m_ref = jnp.max(jnp.abs(v))
        scaled = v * 127.0 / m_ref
        ref = _trunc(scaled)
        assert out.shape == v.shape and out.dtype == jnp.float32
        assert float(jnp.abs(act_max - m_ref)) == 0.0, (act_max, m_ref)
        diff = jnp.abs(out - ref)
        # Exact match everywhere except elements whose scaled value sits within
        # 1e-4 of an integer, where a sub-ULP difference in the scaling may
        # legitimately flip the truncation by one step.
        near_boundary = jnp.abs(scaled - jnp.round(scaled)) < 1e-4
        ok = jnp.all(jnp.where(near_boundary, diff <= 1.0, diff == 0.0))
        assert bool(ok), "quantized output mismatch"

    # Fused single-pass path.
    x = jax.random.normal(jax.random.PRNGKey(0), (2, 4, 16, 16),
                          dtype=jnp.float32) * 3.0
    out, act_max = activation_quantize(x)
    jax.block_until_ready((out, act_max))
    _check(out, act_max, x)

    # Ragged numel (not a multiple of 512) -> exercises the lane-padding path.
    x_odd = jax.random.normal(jax.random.PRNGKey(2), (2, 3, 5, 7),
                              dtype=jnp.float32)
    out3, act_max3 = activation_quantize(x_odd)
    jax.block_until_ready((out3, act_max3))
    _check(out3, act_max3, x_odd)

    # Forced two-pass tiled path.
    x_big = jax.random.normal(jax.random.PRNGKey(1), (4, 16, 32, 32),
                              dtype=jnp.float32) * 2.0
    out2, act_max2 = activation_quantize(x_big, fast_path_bytes=0,
                                         target_block_rows=32)
    jax.block_until_ready((out2, act_max2))
    _check(out2, act_max2, x_big)

    print("KERNEL_OK")
</pallas_src>

<mosaic_0001>
module attributes {stable_mosaic.version = 11 : i64} {
  func.func @_fused_quant_kernel(%arg0: memref<4x512xf32, #tpu.memory_space<vmem>>, %arg1: memref<4x512xf32, #tpu.memory_space<vmem>>, %arg2: memref<1x1xf32, #tpu.memory_space<vmem>>) attributes {dimension_semantics = [], scalar_prefetch = 0 : i64, scratch_operands = 0 : i64, tpu.core_type = #tpu.core_type<tc>} {
    %c0 = arith.constant 0 : index
    %c0_0 = arith.constant 0 : index
    %0 = vector.load %arg0[%c0, %c0_0] : memref<4x512xf32, #tpu.memory_space<vmem>>, vector<4x512xf32>
    %1 = math.absf %0 : vector<4x512xf32>
    %cst = arith.constant dense<0xFF800000> : vector<4xf32>
    %2 = vector.multi_reduction <maximumf>, %1, %cst [1] : vector<4x512xf32> to vector<4xf32>
    %3 = vector.shape_cast %2 : vector<4xf32> to vector<4x1xf32>
    %cst_1 = arith.constant dense<0xFF800000> : vector<1xf32>
    %4 = vector.multi_reduction <maximumf>, %3, %cst_1 [0] : vector<4x1xf32> to vector<1xf32>
    %5 = vector.shape_cast %4 : vector<1xf32> to vector<1x1xf32>
    %c0_2 = arith.constant 0 : index
    %c0_3 = arith.constant 0 : index
    %6 = vector.load %arg2[%c0_2, %c0_3] : memref<1x1xf32, #tpu.memory_space<vmem>>, vector<1x1xf32>
    tpu.vector_store %arg2[%c0_2, %c0_3], %5 {strides = array<i32>} : memref<1x1xf32, #tpu.memory_space<vmem>>, vector<1x1xf32>,
    %cst_4 = arith.constant 1.270000e+02 : f32
    %7 = vector.broadcast %cst_4 : f32 to vector<1x1xf32>
    %8 = arith.divf %7, %5 : vector<1x1xf32>
    %9 = vector.broadcast %8 : vector<1x1xf32> to vector<4x512xf32>
    %10 = arith.mulf %0, %9 : vector<4x512xf32>
    %cst_5 = arith.constant 0.000000e+00 : f32
    %11 = vector.broadcast %cst_5 : f32 to vector<4x512xf32>
    %12 = arith.cmpf oge, %10, %11 : vector<4x512xf32>
    %13 = math.floor %10 : vector<4x512xf32>
    %14 = math.ceil %10 : vector<4x512xf32>
    %15 = arith.select %12, %13, %14 : vector<4x512xi1>, vector<4x512xf32>
    %c0_6 = arith.constant 0 : index
    %c0_7 = arith.constant 0 : index
    %16 = vector.load %arg1[%c0_6, %c0_7] : memref<4x512xf32, #tpu.memory_space<vmem>>, vector<4x512xf32>
    tpu.vector_store %arg1[%c0_6, %c0_7], %15 {strides = array<i32>} : memref<4x512xf32, #tpu.memory_space<vmem>>, vector<4x512xf32>,
    return
  }
}

</mosaic_0001>

<llo_original>
// kernel: tpu_custom_call.1
$region0: #{tpu_custom_call.1}
  #allocation0 [shape = 'u32[]', space=smem, size = 0x4, offset = 0x4, fixed_abs, tag = 'smem constant byte address 0x4 - core index']
  #allocation1 [shape = 'u32[144,128]{1,0:T(1,128)}', space=vmem, size = 0x12000, scoped, tag = 'internal scratch']
  %s0 = inlined_call_operand.hbm [shape: f32[4,512], index: 0, kind: input, shape index: {}]
  %s1 = inlined_call_operand.hbm [shape: f32[4,512], index: 1, kind: output, shape index: {0}]
  %s2 = inlined_call_operand.hbm [shape: f32[1,1], index: 2, kind: output, shape index: {1}]
  %3 = xla_tuple %s1, %s2
  %s4 = sld [smem:[#allocation0]]
  $region26: #{tpu_custom_call.1} parent=0
    _
  %s6 = ssub.s32 1, %s4
  %s7 = scalar_select 0, %s6, %s4
  $region1: #{tpu_custom_call.1} parent=0
    #allocation2 [shape = 'u8[8192]{0}', space=vmem, size = 0x2000, scoped, tag = 'input window, operand 0, single buffered']
    #allocation3 [shape = 's32[1]{0}', space=sflag, size = 0x4, scoped, tag = 'scoped memory for tpu_custom_call.1']
    #allocation4 [shape = 's32[1]{0}', space=sflag, size = 0x4, scoped, tag = 'scoped memory for tpu_custom_call.1']
    #allocation5 [shape = 'u8[8192]{0}', space=vmem, size = 0x2000, scoped, tag = 'output window, operand 0, single buffered']
    #allocation6 [shape = 'u8[512]{0}', space=vmem, size = 0x400, scoped, tag = 'output window, operand 1, single buffered']
    #allocation7 [shape = 's32[1]{0}', space=sflag, size = 0x4, scoped, tag = 'scoped memory for tpu_custom_call.1']
    %8 = vsyncpa [#allocation3], 0
    %9 = vsyncpa [#allocation4], 0
    %10 = vsyncpa [#allocation7], 0
    // Predicated region
    $region2: #{tpu_custom_call.1} parent=1 // pred_check
      _
    $region3: #{tpu_custom_call.1} parent=1 // pred_check_branch
      %12 = sbr.rel (0) target = $region5
    $region4: #{tpu_custom_call.1} parent=1 // pred_region
      %s14 = ssub.s32 256, 256
      %15 = vsyncadd [#allocation3], %s14
      %s17 = sshll.u32 [#allocation2], 4
      %s18 = int_to_ptr.vmem [resolvable:$true] %s17
      %20 = dma.hbm_to_vmem [thread:$0]  %s0, 256, %s18, [#allocation3]
    $region5: #{tpu_custom_call.1} parent=1 // pred_fallthru
      _
    // Predicated region
    $region6: #{tpu_custom_call.1} parent=1 // pred_check
      _
    $region7: #{tpu_custom_call.1} parent=1 // pred_check_branch
      %22 = sbr.rel (0) target = $region9
    $region8: #{tpu_custom_call.1} parent=1 // pred_region
      %23 = dma.done [#allocation3], 256
    $region9: #{tpu_custom_call.1} parent=1 // pred_fallthru
      _
    %v24 = vld [vmem:[#allocation2] sm:$0xff]
    %v25 = vld [vmem:[#allocation2 + $0x8] sm:$0xff]
    %v26 = vand.u32 2147483647, %v24
    %v27 = vand.u32 2147483647, %v25
    %v30 = vcombine.high %v26, %v26
    %v31 = vcombine.high %v27, %v27
    %vm34 = vcmask 1043456
    %v35 = vsel %vm34, %v26, -inf
    %v36 = vsel %vm34, %v30, -inf
    %v37 = vsel %vm34, %v27, -inf
    %v38 = vsel %vm34, %v31, -inf
    %v39 = vmax.f32 %v35, %v36
    %v40 = vmax.f32 %v37, %v38
    %v41 = vmax.f32 %v39, %v40
    %42 = vmax.xlane.f32.xlu0 %v41
    %v43 = vpop.xlane.xlu0 %42
    %v44 = vsel %vm34, %v43, -inf
    %v45 = vrot.slane %v44, 4
    %v46 = vmax.f32 %v44, %v45
    %v47 = vrot.slane %v46, 2
    %v48 = vmax.f32 %v46, %v47
    %v49 = vrot.slane %v48, 1
    %v50 = vmax.f32 %v48, %v49
    %vm51 = vcmask 0
    %52 = vst.msk [vmem:[#allocation6] sm:$0x1] %vm51, %v50
    %v53 = vrcp.pop %v50
    %v54 = vmul.f32 127.0, %v53
    %v55 = vmul.f32 %v24, %v54
    %v56 = vmul.f32 %v25, %v54
    %vm57 = vcmp.ge.f32.partialorder %v55, 0.0
    %vm58 = vcmp.ge.f32.partialorder %v56, 0.0
    %v59 = vfloor.f32 %v55
    %v60 = vfloor.f32 %v56
    %v61 = vceil.f32 %v55
    %v62 = vceil.f32 %v56
    %v63 = vsel %vm57, %v59, %v61
    %v64 = vsel %vm58, %v60, %v62
    %65 = vst [vmem:[#allocation5] sm:$0xff] %v63
    %66 = vst [vmem:[#allocation5 + $0x8] sm:$0xff] %v64
    // Predicated region
    $region10: #{tpu_custom_call.1} parent=1 // pred_check
      _
    $region11: #{tpu_custom_call.1} parent=1 // pred_check_branch
      %68 = sbr.rel (0) target = $region13
    $region12: #{tpu_custom_call.1} parent=1 // pred_region
      %s70 = ssub.s32 256, 256
      %71 = vsyncadd [#allocation4], %s70
      %s73 = sshll.u32 [#allocation5], 4
      %s74 = int_to_ptr.vmem [resolvable:$true] %s73
      %76 = dma.vmem_to_hbm [thread:$0]  %s74, 256, %s1, [#allocation4]
    $region13: #{tpu_custom_call.1} parent=1 // pred_fallthru
      _
    // Predicated region
    $region14: #{tpu_custom_call.1} parent=1 // pred_check
      _
    $region15: #{tpu_custom_call.1} parent=1 // pred_check_branch
      %78 = sbr.rel (0) target = $region17
    $region16: #{tpu_custom_call.1} parent=1 // pred_region
      %s80 = ssub.s32 16, 16
      %81 = vsyncadd [#allocation7], %s80
      %s83 = sshll.u32 [#allocation6], 4
      %s84 = int_to_ptr.vmem [resolvable:$true] %s83
      %86 = dma.vmem_to_hbm [thread:$0]  %s84, 16, %s2, [#allocation7]
    $region17: #{tpu_custom_call.1} parent=1 // pred_fallthru
      _
    // Predicated region
    $region18: #{tpu_custom_call.1} parent=1 // pred_check
      _
    $region19: #{tpu_custom_call.1} parent=1 // pred_check_branch
      %88 = sbr.rel (0) target = $region21
    $region20: #{tpu_custom_call.1} parent=1 // pred_region
      %89 = dma.done [#allocation4], 256
    $region21: #{tpu_custom_call.1} parent=1 // pred_fallthru
      _
    // Predicated region
    $region22: #{tpu_custom_call.1} parent=1 // pred_check
      _
    $region23: #{tpu_custom_call.1} parent=1 // pred_check_branch
      %91 = sbr.rel (0) target = $region25
    $region24: #{tpu_custom_call.1} parent=1 // pred_region
      %92 = dma.done [#allocation7], 16
    $region25: #{tpu_custom_call.1} parent=1 // pred_fallthru
      _
    %93 = vsyncpa [#allocation3], 1
    %94 = vsyncpa [#allocation4], 1
    %95 = vsyncpa [#allocation7], 1

</llo_original>
